<compile_context>
chip_gen: v5e
topology: v5e:2x2
jax: 0.10.0
libtpu: 0.0.40
codegen_flags: <defaults>
</compile_context>

<pallas_src>
import functools
import numpy as np
import jax
import jax.numpy as jnp
from jax import lax
from jax.experimental import pallas as pl
from jax.experimental.pallas import tpu as pltpu


# ----------------------------------------------------------------------------
# fused kernel: (x @ W_c) -> grouped LayerNorm (mean pre-folded) -> pixel-shuffled store
# ----------------------------------------------------------------------------
def _expand_norm_shuffle_kernel(x_ref, wc_ref, pool_ref, bcastg_ref, beta_ref,
                                o_ref, *, eps, rows_per_tile, w_cols, fold_c):
    # x_ref:      (TR, C)         TR = rows_per_tile * w_cols token rows
    # wc_ref:     (C, 16C)        mean-centered expand weight
    # pool_ref:   (16C, 16)       group-mean pooling matrix (entries 1/C or 0)
    # bcastg_ref: (16, 16C)       group->channel broadcast with gamma folded in
    # beta_ref:   (1, 16C)        beta tiled per group
    # o_ref:      (rows_per_tile, 4, w_cols, 4C)  pixel-shuffled output tile
    d = jnp.dot(x_ref[...], wc_ref[...], preferred_element_type=jnp.float32)      # (TR,16C)
    var_g = jnp.dot(d * d, pool_ref[...], preferred_element_type=jnp.float32)     # (TR,16)
    scale = jnp.dot(lax.rsqrt(var_g + eps), bcastg_ref[...],
                    preferred_element_type=jnp.float32)                           # (TR,16C)
    y = (d * scale + beta_ref[...]).astype(o_ref.dtype)                           # (TR,16C)

    # pixel shuffle along p1: four lane-aligned 4C-wide slabs; the reshape only
    # splits the leading (token-row) dim, so no lane/sublane data movement.
    for p1 in range(4):
        slab = y[:, p1 * fold_c:(p1 + 1) * fold_c]                                # (TR,4C)
        o_ref[:, p1, :, :] = slab.reshape(rows_per_tile, w_cols, fold_c)


def _pick_rows_per_tile(bh, w, sd, tokens_cap, vmem_limit_bytes):
    """Image rows (multiple-of-W tokens) per tile; VMEM-budgeted; prefer >=2 steps."""
    per_token_f32 = sd * 4 * 5            # d, scale, y + 2x double-buffered out tile
    budget_tokens = max(w, (vmem_limit_bytes // 2) // max(per_token_f32, 1))
    cap_tokens = max(w, min(tokens_cap, budget_tokens))
    divisors = [d for d in range(1, bh + 1) if bh % d == 0 and d * w <= cap_tokens]
    if not divisors:
        return 1
    # keep >= 2 grid steps when possible so both v7x TensorCores get work
    two_plus = [d for d in divisors if bh // d >= 2]
    return two_plus[-1] if two_plus else divisors[-1]


# ----------------------------------------------------------------------------
# wrapper
# ----------------------------------------------------------------------------
def final_patch_expand_x4(x, w_expand, gamma, beta, *, H, W, dim_scale=4,
                          eps=1e-5, tile_tokens_cap=1024,
                          matmul_dtype=jnp.bfloat16, out_dtype=None,
                          vmem_limit_bytes=64 * 1024 * 1024):
    B, L, C = x.shape
    assert L == H * W, "input feature has wrong size"
    assert dim_scale == 4, "module hard-codes Linear(dim, 16*dim)"
    S = dim_scale * dim_scale            # 16 LayerNorm groups per token
    SD = S * C                           # expanded channels
    FC = dim_scale * C                   # channels per p1 slab (p2-major, then c)
    assert w_expand.shape == (C, SD)
    out_dtype = x.dtype if out_dtype is None else out_dtype

    # Fold the LayerNorm mean into the weight (Linear has no bias):
    #   d = x @ W_c  ==  (x @ W) - group_mean(x @ W)
    wr = jnp.asarray(w_expand, jnp.float32).reshape(C, S, C)
    w_c = (wr - jnp.mean(wr, axis=2, keepdims=True)).reshape(C, SD)

    x2d = x.reshape(B * L, C)
    if matmul_dtype is not None:         # cast OUTSIDE the kernel (halves DMA bytes)
        x2d = x2d.astype(matmul_dtype)
        w_c = w_c.astype(matmul_dtype)

    # Constant pooling / broadcast matrices for the grouped LayerNorm stats.
    group = np.arange(SD) // C
    pool = jnp.asarray((group[:, None] == np.arange(S)[None, :]).astype(np.float32) / C)
    gamma_t = jnp.tile(jnp.asarray(gamma, jnp.float32).reshape(1, C), (1, S))     # (1,SD)
    bcastg = jnp.asarray((np.arange(S)[:, None] == group[None, :]).astype(np.float32)) * gamma_t
    beta_t = jnp.tile(jnp.asarray(beta, jnp.float32).reshape(1, C), (1, S))       # (1,SD)

    BH = B * H
    th = _pick_rows_per_tile(BH, W, SD, tile_tokens_cap, vmem_limit_bytes)
    tr = th * W                          # token rows per grid step
    grid = (BH // th,)

    R = B * L
    flops = (2 * R * C * SD + 2 * R * SD * S + 2 * R * S * SD + 4 * R * SD)
    bytes_accessed = (R * C * x2d.dtype.itemsize + C * SD * w_c.dtype.itemsize
                      + SD * S * 4 + S * SD * 4 + SD * 4
                      + R * SD * jnp.dtype(out_dtype).itemsize)
    cost = pl.CostEstimate(flops=flops, transcendentals=R * S,
                           bytes_accessed=bytes_accessed)

    kernel = functools.partial(_expand_norm_shuffle_kernel, eps=eps,
                               rows_per_tile=th, w_cols=W, fold_c=FC)

    # Output laid out as (B*H, 4, W, 4C); its row-major order IS the final
    # (B, 16*H*W, C) order, so the trailing reshape is free (no transpose).
    # TODO(synk): on v7x one could additionally single-buffer the resident
    # constant operands (pipeline_mode=pl.Buffered(1)) for extra VMEM headroom.
    out4 = pl.pallas_call(
        kernel,
        out_shape=jax.ShapeDtypeStruct((BH, 4, W, FC), out_dtype),
        grid=grid,
        in_specs=[
            pl.BlockSpec((tr, C), lambda i: (i, 0)),     # x token rows
            pl.BlockSpec((C, SD), lambda i: (0, 0)),     # centered weight (resident)
            pl.BlockSpec((SD, S), lambda i: (0, 0)),     # pooling matrix
            pl.BlockSpec((S, SD), lambda i: (0, 0)),     # broadcast matrix (gamma folded)
            pl.BlockSpec((1, SD), lambda i: (0, 0)),     # beta (tiled per group)
        ],
        out_specs=pl.BlockSpec((th, 4, W, FC), lambda i: (i, 0, 0, 0)),
        compiler_params=pltpu.CompilerParams(
            dimension_semantics=("parallel",),
            vmem_limit_bytes=vmem_limit_bytes),
        cost_estimate=cost,
    )(x2d, w_c, pool, bcastg, beta_t)

    return out4.reshape(B, S * H * W, C)


# ----------------------------------------------------------------------------
# pure-JAX reference (matches the PyTorch forward)
# ----------------------------------------------------------------------------
def _reference(x, w, gamma, beta, H, W, dim_scale, eps=1e-5):
    B, L, C = x.shape
    h = jnp.einsum("blc,cd->bld", x, w, precision=lax.Precision.HIGHEST)
    p = dim_scale
    h = h.reshape(B, H, W, p, p, C).transpose(0, 1, 3, 2, 4, 5)
    h = h.reshape(B, H * p * W * p, C)
    mu = jnp.mean(h, axis=-1, keepdims=True)
    var = jnp.mean(jnp.square(h - mu), axis=-1, keepdims=True)
    return (h - mu) * lax.rsqrt(var + eps) * gamma + beta


if __name__ == "__main__":
    # small config consistent with the module: dim=32, input_resolution=(8,8)
    B, H, W, C = 2, 8, 8, 32
    dim_scale = 4

    key = jax.random.PRNGKey(0)
    kx, kw, kg, kb = jax.random.split(key, 4)
    x = jax.random.normal(kx, (B, H * W, C), jnp.float32)                   # (B, L, C)
    w_expand = jax.random.normal(kw, (C, dim_scale * dim_scale * C), jnp.float32) * 0.02
    gamma = 1.0 + 0.1 * jax.random.normal(kg, (C,), jnp.float32)
    beta = 0.1 * jax.random.normal(kb, (C,), jnp.float32)

    ref = jax.block_until_ready(_reference(x, w_expand, gamma, beta, H, W, dim_scale))

    # (1) f32-operand path: tight check of fused LN + folded pixel-shuffle layout
    out_f32 = jax.block_until_ready(
        final_patch_expand_x4(x, w_expand, gamma, beta, H=H, W=W,
                              dim_scale=dim_scale, matmul_dtype=None))
    assert out_f32.shape == (B, dim_scale * dim_scale * H * W, C)
    err_f32 = float(jnp.max(jnp.abs(out_f32 - ref)))
    assert err_f32 < 5e-3, f"f32-path max abs error {err_f32}"

    # (2) default perf config: bf16 MXU operands, f32 accumulation / LN stats
    out_bf16 = jax.block_until_ready(
        final_patch_expand_x4(x, w_expand, gamma, beta, H=H, W=W,
                              dim_scale=dim_scale))
    assert out_bf16.shape == (B, dim_scale * dim_scale * H * W, C)
    err_bf16 = float(jnp.max(jnp.abs(out_bf16 - ref)))
    assert err_bf16 < 1e-1, f"bf16-path max abs error {err_bf16}"

    print("KERNEL_OK")
</pallas_src>

<mosaic_0001>
module attributes {stable_mosaic.version = 11 : i64} {
  func.func @_expand_norm_shuffle_kernel(%arg0: i32, %arg1: memref<64x32xf32, #tpu.memory_space<vmem>>, %arg2: memref<32x512xf32, #tpu.memory_space<vmem>>, %arg3: memref<512x16xf32, #tpu.memory_space<vmem>>, %arg4: memref<16x512xf32, #tpu.memory_space<vmem>>, %arg5: memref<1x512xf32, #tpu.memory_space<vmem>>, %arg6: memref<8x4x8x128xf32, #tpu.memory_space<vmem>>) attributes {dimension_semantics = [#tpu.dimension_semantics<parallel>], iteration_bounds = array<i64: 2>, scalar_prefetch = 0 : i64, scratch_operands = 0 : i64, tpu.core_type = #tpu.core_type<tc>, window_params = [{transform_indices = @transform_0, window_bounds = array<i64: 64, 32>}, {pipeline_mode = #tpu.pipeline_mode<synchronous>, transform_indices = @transform_1, window_bounds = array<i64: 32, 512>}, {pipeline_mode = #tpu.pipeline_mode<synchronous>, transform_indices = @transform_2, window_bounds = array<i64: 512, 16>}, {pipeline_mode = #tpu.pipeline_mode<synchronous>, transform_indices = @transform_3, window_bounds = array<i64: 16, 512>}, {pipeline_mode = #tpu.pipeline_mode<synchronous>, transform_indices = @transform_4, window_bounds = array<i64: 1, 512>}, {transform_indices = @transform_5, window_bounds = array<i64: 8, 4, 8, 128>}]} {
    %c0 = arith.constant 0 : index
    %c0_0 = arith.constant 0 : index
    %0 = vector.load %arg1[%c0, %c0_0] : memref<64x32xf32, #tpu.memory_space<vmem>>, vector<64x32xf32>
    %c0_1 = arith.constant 0 : index
    %c0_2 = arith.constant 0 : index
    %1 = vector.load %arg2[%c0_1, %c0_2] : memref<32x512xf32, #tpu.memory_space<vmem>>, vector<32x512xf32>
    %cst = arith.constant dense<0.000000e+00> : vector<64x512xf32>
    %2 = tpu.matmul %0, %1, %cst {dimension_numbers = #tpu.dot_dimension_numbers<[1], [0], [0], [1], [0, 0, 1, 1], [], []>} : vector<64x32xf32>, vector<32x512xf32>, vector<64x512xf32> -> vector<64x512xf32>
    %3 = arith.mulf %2, %2 : vector<64x512xf32>
    %c0_3 = arith.constant 0 : index
    %c0_4 = arith.constant 0 : index
    %4 = vector.load %arg3[%c0_3, %c0_4] : memref<512x16xf32, #tpu.memory_space<vmem>>, vector<512x16xf32>
    %cst_5 = arith.constant dense<0.000000e+00> : vector<64x16xf32>
    %5 = tpu.matmul %3, %4, %cst_5 {dimension_numbers = #tpu.dot_dimension_numbers<[1], [0], [0], [1], [0, 0, 1, 1], [], []>} : vector<64x512xf32>, vector<512x16xf32>, vector<64x16xf32> -> vector<64x16xf32>
    %cst_6 = arith.constant 9.99999974E-6 : f32
    %6 = vector.broadcast %cst_6 : f32 to vector<64x16xf32>
    %7 = arith.addf %5, %6 : vector<64x16xf32>
    %8 = math.rsqrt %7 : vector<64x16xf32>
    %c0_7 = arith.constant 0 : index
    %c0_8 = arith.constant 0 : index
    %9 = vector.load %arg4[%c0_7, %c0_8] : memref<16x512xf32, #tpu.memory_space<vmem>>, vector<16x512xf32>
    %cst_9 = arith.constant dense<0.000000e+00> : vector<64x512xf32>
    %10 = tpu.matmul %8, %9, %cst_9 {dimension_numbers = #tpu.dot_dimension_numbers<[1], [0], [0], [1], [0, 0, 1, 1], [], []>} : vector<64x16xf32>, vector<16x512xf32>, vector<64x512xf32> -> vector<64x512xf32>
    %11 = arith.mulf %2, %10 : vector<64x512xf32>
    %c0_10 = arith.constant 0 : index
    %c0_11 = arith.constant 0 : index
    %12 = vector.load %arg5[%c0_10, %c0_11] : memref<1x512xf32, #tpu.memory_space<vmem>>, vector<1x512xf32>
    %13 = vector.broadcast %12 : vector<1x512xf32> to vector<64x512xf32>
    %14 = arith.addf %11, %13 : vector<64x512xf32>
    %15 = vector.extract_strided_slice %14 {offsets = [0, 0], sizes = [64, 128], strides = [1, 1]} : vector<64x512xf32> to vector<64x128xf32>
    %16 = vector.shape_cast %15 : vector<64x128xf32> to vector<8x8x128xf32>
    %c0_12 = arith.constant 0 : index
    %c0_13 = arith.constant 0 : index
    %c0_14 = arith.constant 0 : index
    %c0_15 = arith.constant 0 : index
    %17 = vector.load %arg6[%c0_12, %c0_13, %c0_14, %c0_15] : memref<8x4x8x128xf32, #tpu.memory_space<vmem>>, vector<8x1x8x128xf32>
    %18 = vector.shape_cast %17 : vector<8x1x8x128xf32> to vector<8x8x128xf32>
    %19 = vector.shape_cast %16 : vector<8x8x128xf32> to vector<8x1x8x128xf32>
    tpu.vector_store %arg6[%c0_12, %c0_13, %c0_14, %c0_15], %19 {strides = array<i32>} : memref<8x4x8x128xf32, #tpu.memory_space<vmem>>, vector<8x1x8x128xf32>,
    %20 = vector.extract_strided_slice %14 {offsets = [0, 128], sizes = [64, 128], strides = [1, 1]} : vector<64x512xf32> to vector<64x128xf32>
    %21 = vector.shape_cast %20 : vector<64x128xf32> to vector<8x8x128xf32>
    %c0_16 = arith.constant 0 : index
    %c1 = arith.constant 1 : index
    %c0_17 = arith.constant 0 : index
    %c0_18 = arith.constant 0 : index
    %22 = vector.load %arg6[%c0_16, %c1, %c0_17, %c0_18] : memref<8x4x8x128xf32, #tpu.memory_space<vmem>>, vector<8x1x8x128xf32>
    %23 = vector.shape_cast %22 : vector<8x1x8x128xf32> to vector<8x8x128xf32>
    %24 = vector.shape_cast %21 : vector<8x8x128xf32> to vector<8x1x8x128xf32>
    tpu.vector_store %arg6[%c0_16, %c1, %c0_17, %c0_18], %24 {strides = array<i32>} : memref<8x4x8x128xf32, #tpu.memory_space<vmem>>, vector<8x1x8x128xf32>,
    %25 = vector.extract_strided_slice %14 {offsets = [0, 256], sizes = [64, 128], strides = [1, 1]} : vector<64x512xf32> to vector<64x128xf32>
    %26 = vector.shape_cast %25 : vector<64x128xf32> to vector<8x8x128xf32>
    %c0_19 = arith.constant 0 : index
    %c2 = arith.constant 2 : index
    %c0_20 = arith.constant 0 : index
    %c0_21 = arith.constant 0 : index
    %27 = vector.load %arg6[%c0_19, %c2, %c0_20, %c0_21] : memref<8x4x8x128xf32, #tpu.memory_space<vmem>>, vector<8x1x8x128xf32>
    %28 = vector.shape_cast %27 : vector<8x1x8x128xf32> to vector<8x8x128xf32>
    %29 = vector.shape_cast %26 : vector<8x8x128xf32> to vector<8x1x8x128xf32>
    tpu.vector_store %arg6[%c0_19, %c2, %c0_20, %c0_21], %29 {strides = array<i32>} : memref<8x4x8x128xf32, #tpu.memory_space<vmem>>, vector<8x1x8x128xf32>,
    %30 = vector.extract_strided_slice %14 {offsets = [0, 384], sizes = [64, 128], strides = [1, 1]} : vector<64x512xf32> to vector<64x128xf32>
    %31 = vector.shape_cast %30 : vector<64x128xf32> to vector<8x8x128xf32>
    %c0_22 = arith.constant 0 : index
    %c3 = arith.constant 3 : index
    %c0_23 = arith.constant 0 : index
    %c0_24 = arith.constant 0 : index
    %32 = vector.load %arg6[%c0_22, %c3, %c0_23, %c0_24] : memref<8x4x8x128xf32, #tpu.memory_space<vmem>>, vector<8x1x8x128xf32>
    %33 = vector.shape_cast %32 : vector<8x1x8x128xf32> to vector<8x8x128xf32>
    %34 = vector.shape_cast %31 : vector<8x8x128xf32> to vector<8x1x8x128xf32>
    tpu.vector_store %arg6[%c0_22, %c3, %c0_23, %c0_24], %34 {strides = array<i32>} : memref<8x4x8x128xf32, #tpu.memory_space<vmem>>, vector<8x1x8x128xf32>,
    return
  }
  func.func @transform_0(%arg0: i32) -> (i32, i32) {
    %c0_i32 = arith.constant 0 : i32
    %c0_i32_0 = arith.constant 0 : i32
    return %arg0, %c0_i32 : i32, i32
  }
  func.func @transform_1(%arg0: i32) -> (i32, i32) {
    %c0_i32 = arith.constant 0 : i32
    %c0_i32_0 = arith.constant 0 : i32
    %c0_i32_1 = arith.constant 0 : i32
    return %c0_i32, %c0_i32_0 : i32, i32
  }
  func.func @transform_2(%arg0: i32) -> (i32, i32) {
    %c0_i32 = arith.constant 0 : i32
    %c0_i32_0 = arith.constant 0 : i32
    %c0_i32_1 = arith.constant 0 : i32
    return %c0_i32, %c0_i32_0 : i32, i32
  }
  func.func @transform_3(%arg0: i32) -> (i32, i32) {
    %c0_i32 = arith.constant 0 : i32
    %c0_i32_0 = arith.constant 0 : i32
    %c0_i32_1 = arith.constant 0 : i32
    return %c0_i32, %c0_i32_0 : i32, i32
  }
  func.func @transform_4(%arg0: i32) -> (i32, i32) {
    %c0_i32 = arith.constant 0 : i32
    %c0_i32_0 = arith.constant 0 : i32
    %c0_i32_1 = arith.constant 0 : i32
    return %c0_i32, %c0_i32_0 : i32, i32
  }
  func.func @transform_5(%arg0: i32) -> (i32, i32, i32, i32) {
    %c0_i32 = arith.constant 0 : i32
    %c0_i32_0 = arith.constant 0 : i32
    %c0_i32_1 = arith.constant 0 : i32
    %c0_i32_2 = arith.constant 0 : i32
    return %arg0, %c0_i32, %c0_i32_0, %c0_i32_1 : i32, i32, i32, i32
  }
}

</mosaic_0001>

<llo_original>
// kernel: tpu_custom_call.1
$region0: #{tpu_custom_call.1}
  #allocation0 [shape = 'u32[]', space=smem, size = 0x4, offset = 0x4, fixed_abs, tag = 'smem constant byte address 0x4 - core index']
  #allocation1 [shape = 'u32[72,128]{1,0:T(1,128)}', space=vmem, size = 0x9000, scoped, tag = 'internal scratch']
  %s0 = inlined_call_operand.vmem [shape: f32[128,32], index: 0, kind: input, shape index: {}]
  %s1 = inlined_call_operand.vmem [shape: f32[32,512], index: 1, kind: input, shape index: {}]
  %s2 = inlined_call_operand.vmem [shape: f32[512,16], index: 2, kind: input, shape index: {}]
  %s3 = inlined_call_operand.vmem [shape: f32[16,512], index: 3, kind: input, shape index: {}]
  %s4 = inlined_call_operand.vmem [shape: f32[1,512], index: 4, kind: input, shape index: {}]
  %s5 = inlined_call_operand.hbm [shape: f32[16,4,8,128], index: 5, kind: output, shape index: {}]
  %s6 = sld [smem:[#allocation0]]
  $region53: #{tpu_custom_call.1} parent=0
    _
  %s8 = ssub.s32 1, %s6
  %s9 = scalar_select 0, %s8, %s6
  $region1: #{tpu_custom_call.1} parent=0
    #allocation2 [shape = 'u8[262144]{0}', space=vmem, size = 0x40000, scoped, tag = 'output window, operand 0']
    #allocation3 [shape = 's32[2]{0}', space=sflag, size = 0x8, scoped, tag = 'scoped memory for tpu_custom_call.1']
    %10 = vsyncpa [#allocation3], 0
    %s11 = scalar_lea.sflag [#allocation3], 1
    %12 = vsyncpa %s11, 0
    loop: start=0, step=1, limit=4
    $region2: #{tpu_custom_call.1} parent=1 // loop_pre_header
      _
    $region3: #{tpu_custom_call.1} parent=1 // loop_header
      %s14 = sphi 0, %s18
      %p15 = scmp.ge.s32.totalorder %s14, 4
      %s24 = sphi 0, %s26
      %s27 = sphi 0, %s24
      %s28 = sphi 0, %s27
      %s44 = sphi 0, %s28
      %s48 = sphi 0, %s48
      %s50 = sphi 0, %s48
      %s51 = sphi 0, %s50
      %s65 = sphi 0, %s51
      %s69 = sphi 0, %s69
      %s71 = sphi 0, %s69
      %s72 = sphi 0, %s71
      %s86 = sphi 0, %s72
      %s90 = sphi 0, %s90
      %s92 = sphi 0, %s90
      %s93 = sphi 0, %s92
      %s107 = sphi 0, %s93
      %s111 = sphi 0, %s111
      %s113 = sphi 0, %s111
      %s114 = sphi 0, %s113
      %s128 = sphi 0, %s114
      %s134 = sphi 0, %s136
      %s137 = sphi 0, %s134
      %s138 = sphi 0, %s137
      %s154 = sphi 0, %s138
    $region4: #{tpu_custom_call.1} parent=1 // loop_header_branch
      %17 = sbr.rel (%p15) target = $region8
    $region5: #{tpu_custom_call.1} parent=1 // loop_body
      %s19 = ssub.s32 %s14, 1
      %s20 = ssub.s32 %s14, 2
      %s21 = sadd.s32 %s14, 1
      %s22 = ssub.s32 %s14, %s21
      %p23 = scmp.eq.s32.totalorder %s22, 0
      %s25 = sadd.s32 %s24, 1
      %s26 = scalar_select %p23, %s24, %s25
      %p29 = pneg %p23
      %p30 = scmp.eq.s32.totalorder %s14, 1
      %p31 = por %p29, %p30
      %p32 = scmp.ne.s32.totalorder %s24, %s27
      %p33 = scmp.eq.s32.totalorder %s14, 0
      %p34 = por %p32, %p33
      %p35 = scmp.ne.s32.totalorder %s24, %s27
      %p36 = scmp.eq.s32.totalorder %s19, 1
      %p37 = por %p35, %p36
      %p38 = scmp.ne.s32.totalorder %s27, %s28
      %p39 = scmp.eq.s32.totalorder %s19, 0
      %p40 = por %p38, %p39
      %p41 = scmp.ne.s32.totalorder %s27, %s28
      %p42 = scmp.eq.s32.totalorder %s20, 1
      %p43 = por %p41, %p42
      %p45 = scmp.ne.s32.totalorder %s28, %s44
      %p46 = scmp.eq.s32.totalorder %s20, 0
      %p47 = por %p45, %p46
      %s49 = sadd.s32 %s48, 1
      %p52 = scmp.eq.s32.totalorder %s14, 1
      %p53 = scmp.ne.s32.totalorder %s48, %s50
      %p54 = scmp.eq.s32.totalorder %s14, 0
      %p55 = por %p53, %p54
      %p56 = scmp.ne.s32.totalorder %s48, %s50
      %p57 = scmp.eq.s32.totalorder %s19, 1
      %p58 = por %p56, %p57
      %p59 = scmp.ne.s32.totalorder %s50, %s51
      %p60 = scmp.eq.s32.totalorder %s19, 0
      %p61 = por %p59, %p60
      %p62 = scmp.ne.s32.totalorder %s50, %s51
      %p63 = scmp.eq.s32.totalorder %s20, 1
      %p64 = por %p62, %p63
      %p66 = scmp.ne.s32.totalorder %s51, %s65
      %p67 = scmp.eq.s32.totalorder %s20, 0
      %p68 = por %p66, %p67
      %s70 = sadd.s32 %s69, 1
      %p73 = scmp.eq.s32.totalorder %s14, 1
      %p74 = scmp.ne.s32.totalorder %s69, %s71
      %p75 = scmp.eq.s32.totalorder %s14, 0
      %p76 = por %p74, %p75
      %p77 = scmp.ne.s32.totalorder %s69, %s71
      %p78 = scmp.eq.s32.totalorder %s19, 1
      %p79 = por %p77, %p78
      %p80 = scmp.ne.s32.totalorder %s71, %s72
      %p81 = scmp.eq.s32.totalorder %s19, 0
      %p82 = por %p80, %p81
      %p83 = scmp.ne.s32.totalorder %s71, %s72
      %p84 = scmp.eq.s32.totalorder %s20, 1
      %p85 = por %p83, %p84
      %p87 = scmp.ne.s32.totalorder %s72, %s86
      %p88 = scmp.eq.s32.totalorder %s20, 0
      %p89 = por %p87, %p88
      %s91 = sadd.s32 %s90, 1
      %p94 = scmp.eq.s32.totalorder %s14, 1
      %p95 = scmp.ne.s32.totalorder %s90, %s92
      %p96 = scmp.eq.s32.totalorder %s14, 0
      %p97 = por %p95, %p96
      %p98 = scmp.ne.s32.totalorder %s90, %s92
      %p99 = scmp.eq.s32.totalorder %s19, 1
      %p100 = por %p98, %p99
      %p101 = scmp.ne.s32.totalorder %s92, %s93
      %p102 = scmp.eq.s32.totalorder %s19, 0
      %p103 = por %p101, %p102
      %p104 = scmp.ne.s32.totalorder %s92, %s93
      %p105 = scmp.eq.s32.totalorder %s20, 1
      %p106 = por %p104, %p105
      %p108 = scmp.ne.s32.totalorder %s93, %s107
      %p109 = scmp.eq.s32.totalorder %s20, 0
      %p110 = por %p108, %p109
      %s112 = sadd.s32 %s111, 1
      %p115 = scmp.eq.s32.totalorder %s14, 1
      %p116 = scmp.ne.s32.totalorder %s111, %s113
      %p117 = scmp.eq.s32.totalorder %s14, 0
      %p118 = por %p116, %p117
      %p119 = scmp.ne.s32.totalorder %s111, %s113
      %p120 = scmp.eq.s32.totalorder %s19, 1
      %p121 = por %p119, %p120
      %p122 = scmp.ne.s32.totalorder %s113, %s114
      %p123 = scmp.eq.s32.totalorder %s19, 0
      %p124 = por %p122, %p123
      %p125 = scmp.ne.s32.totalorder %s113, %s114
      %p126 = scmp.eq.s32.totalorder %s20, 1
      %p127 = por %p125, %p126
      %p129 = scmp.ne.s32.totalorder %s114, %s128
      %p130 = scmp.eq.s32.totalorder %s20, 0
      %p131 = por %p129, %p130
      %s132 = ssub.s32 %s14, %s21
      %p133 = scmp.eq.s32.totalorder %s132, 0
      %s135 = sadd.s32 %s134, 1
      %s136 = scalar_select %p133, %s134, %s135
      %p139 = pneg %p133
      %p140 = scmp.eq.s32.totalorder %s14, 1
      %p141 = por %p139, %p140
      %p142 = scmp.ne.s32.totalorder %s134, %s137
      %p143 = scmp.eq.s32.totalorder %s14, 0
      %p144 = por %p142, %p143
      %p145 = scmp.ne.s32.totalorder %s134, %s137
      %p146 = scmp.eq.s32.totalorder %s19, 1
      %p147 = por %p145, %p146
      %p148 = scmp.ne.s32.totalorder %s137, %s138
      %p149 = scmp.eq.s32.totalorder %s19, 0
      %p150 = por %p148, %p149
      %p151 = scmp.ne.s32.totalorder %s137, %s138
      %p152 = scmp.eq.s32.totalorder %s20, 1
      %p153 = por %p151, %p152
      %p155 = scmp.ne.s32.totalorder %s138, %s154
      %p156 = scmp.eq.s32.totalorder %s20, 0
      %p157 = por %p155, %p156
      %p158 = scmp.le.s32.totalorder 1, %s14
      %p159 = scmp.lt.s32.totalorder %s14, 3
      %p160 = pnand %p158, %p159
      %p161 = pneg %p160
      // Predicated region
      $region9: #{tpu_custom_call.1} parent=5 // pred_check
        _
      $region10: #{tpu_custom_call.1} parent=5 // pred_check_branch
        %163 = sbr.rel (%p160) target = $region12
      $region11: #{tpu_custom_call.1} parent=5 // pred_region
        %s164 = ssub.s32 %s14, 1
        // Predicated region
        $region13: #{tpu_custom_call.1} parent=11 // pred_check
          %p165 = pneg %p61
        $region14: #{tpu_custom_call.1} parent=11 // pred_check_branch
          %167 = sbr.rel (%p165) target = $region16
        $region15: #{tpu_custom_call.1} parent=11 // pred_region
          _
        $region16: #{tpu_custom_call.1} parent=11 // pred_fallthru
          _
        // Predicated region
        $region17: #{tpu_custom_call.1} parent=11 // pred_check
          %p168 = pneg %p82
        $region18: #{tpu_custom_call.1} parent=11 // pred_check_branch
          %170 = sbr.rel (%p168) target = $region20
        $region19: #{tpu_custom_call.1} parent=11 // pred_region
          _
        $region20: #{tpu_custom_call.1} parent=11 // pred_fallthru
          _
        // Predicated region
        $region21: #{tpu_custom_call.1} parent=11 // pred_check
          %p171 = pneg %p103
        $region22: #{tpu_custom_call.1} parent=11 // pred_check_branch
          %173 = sbr.rel (%p171) target = $region24
        $region23: #{tpu_custom_call.1} parent=11 // pred_region
          _
        $region24: #{tpu_custom_call.1} parent=11 // pred_fallthru
          _
        // Predicated region
        $region25: #{tpu_custom_call.1} parent=11 // pred_check
          %p174 = pneg %p124
        $region26: #{tpu_custom_call.1} parent=11 // pred_check_branch
          %176 = sbr.rel (%p174) target = $region28
        $region27: #{tpu_custom_call.1} parent=11 // pred_region
          _
        $region28: #{tpu_custom_call.1} parent=11 // pred_fallthru
          _
      $region12: #{tpu_custom_call.1} parent=5 // pred_fallthru
        _
      %p177 = scmp.lt.s32.totalorder %s14, 2
      // Predicated region
      $region29: #{tpu_custom_call.1} parent=5 // pred_check
        %p178 = pneg %p177
      $region30: #{tpu_custom_call.1} parent=5 // pred_check_branch
        %180 = sbr.rel (%p178) target = $region32
      $region31: #{tpu_custom_call.1} parent=5 // pred_region
        // Predicated region
        $region33: #{tpu_custom_call.1} parent=31 // pred_check
          %p181 = pneg %p34
        $region34: #{tpu_custom_call.1} parent=31 // pred_check_branch
          %183 = sbr.rel (%p181) target = $region36
        $region35: #{tpu_custom_call.1} parent=31 // pred_region
          %s184 = smul.u32 8, %s14
          %p185 = scmp.lt.s32.totalorder %s184, 15
          %s186 = scalar_select %p185, %s184, 15
          %s187 = smul.addr %s186, 8
          %s188 = scalar_lea.vmem %s0, %s187
          %s189 = smul.u32 8, %s14
        $region36: #{tpu_custom_call.1} parent=31 // pred_fallthru
          _
      $region32: #{tpu_custom_call.1} parent=5 // pred_fallthru
        _
      %p190 = scmp.le.s32.totalorder 1, %s14
      %p191 = scmp.lt.s32.totalorder %s14, 3
      %p192 = pnand %p190, %p191
      %p193 = pneg %p192
      // Predicated region
      $region37: #{tpu_custom_call.1} parent=5 // pred_check
        _
      $region38: #{tpu_custom_call.1} parent=5 // pred_check_branch
        %195 = sbr.rel (%p192) target = $region40
      $region39: #{tpu_custom_call.1} parent=5 // pred_region
        %s196 = ssub.s32 %s14, 1
        %s197 = smul.u32 8, %s19
        %p198 = scmp.lt.s32.totalorder %s197, 15
        %s199 = scalar_select %p198, %s197, 15
        %s200 = smul.addr %s199, 8
        %s201 = scalar_lea.vmem %s0, %s200
        %p202 = pneg %p40
        %p203 = pneg %p37
        %p204 = pneg %p61
        %p205 = pneg %p58
        %p206 = pneg %p82
        %p207 = pneg %p79
        %p208 = pneg %p103
        %p209 = pneg %p100
        %p210 = pneg %p124
        %p211 = pneg %p121
        %p212 = pneg %p150
        %p213 = pneg %p147
        %s214 = sand.u32 %s137, 1
        %s215 = scalar_lea.sflag [#allocation3], %s214
        %s216 = sand.u32 %s137, 1
        %s217 = smul.addr %s216, 256
        %s218 = scalar_lea.vmem [#allocation2], %s217
        %s219 = smul.u32 8, %s19
        %p220 = scmp.lt.s32.totalorder %s219, 15
        %s221 = scalar_select %p220, %s219, 15
        %s222 = smul.addr %s221, 8
        %s223 = scalar_lea.vmem %s0, %s222
        %s224 = smul.u32 8, %s19
        %s225 = smul.u32 8, %s19
        %v226 = vld [vmem:[%s223] sm:$0xff]
        %v227 = vld [vmem:[%s223 + $0x8] sm:$0xff]
        %v228 = vld [vmem:[%s223 + $0x10] sm:$0xff]
        %v229 = vld [vmem:[%s223 + $0x18] sm:$0xff]
        %v230 = vld [vmem:[%s223 + $0x20] sm:$0xff]
        %v231 = vld [vmem:[%s223 + $0x28] sm:$0xff]
        %v232 = vld [vmem:[%s223 + $0x30] sm:$0xff]
        %v233 = vld [vmem:[%s223 + $0x38] sm:$0xff]
        %v234 = vld [vmem:[%s1] sm:$0xff]
        %v235 = vld [vmem:[%s1 + $0x8] sm:$0xff]
        %v236 = vld [vmem:[%s1 + $0x10] sm:$0xff]
        %v237 = vld [vmem:[%s1 + $0x18] sm:$0xff]
        %v238 = vld [vmem:[%s1 + $0x20] sm:$0xff]
        %v239 = vld [vmem:[%s1 + $0x28] sm:$0xff]
        %v240 = vld [vmem:[%s1 + $0x30] sm:$0xff]
        %v241 = vld [vmem:[%s1 + $0x38] sm:$0xff]
        %v242 = vld [vmem:[%s1 + $0x40] sm:$0xff]
        %v243 = vld [vmem:[%s1 + $0x48] sm:$0xff]
        %v244 = vld [vmem:[%s1 + $0x50] sm:$0xff]
        %v245 = vld [vmem:[%s1 + $0x58] sm:$0xff]
        %v246 = vld [vmem:[%s1 + $0x60] sm:$0xff]
        %v247 = vld [vmem:[%s1 + $0x68] sm:$0xff]
        %v248 = vld [vmem:[%s1 + $0x70] sm:$0xff]
        %v249 = vld [vmem:[%s1 + $0x78] sm:$0xff]
        %vm250 = vcmask 261120
        %v252 = vsel %vm250, %v226, 0
        %v255 = vsel %vm250, %v227, 0
        %v258 = vsel %vm250, %v228, 0
        %v261 = vsel %vm250, %v229, 0
        %v264 = vsel %vm250, %v230, 0
        %v267 = vsel %vm250, %v231, 0
        %v270 = vsel %vm250, %v232, 0
        %v273 = vsel %vm250, %v233, 0
        %275 = vmatpush.msra.mxu0 0.0
        %276 = vmatpush.msra.mxu0 0.0
        %277 = vmatpush.msra.mxu0 0.0
        %278 = vmatpush.msra.mxu0 0.0
        %279 = vmatpush.msra.mxu0 0.0
        %280 = vmatpush.msra.mxu0 0.0
        %281 = vmatpush.msra.mxu0 0.0
        %282 = vmatpush.msra.mxu0 0.0
        %283 = vmatpush.msra.mxu0 0.0
        %284 = vmatpush.msra.mxu0 0.0
        %285 = vmatpush.msra.mxu0 0.0
        %286 = vmatpush.msra.mxu0 0.0
        %287 = vmatpush.msra.mxu0 %v246
        %288 = vmatpush.msra.mxu0 %v242
        %289 = vmatpush.msra.mxu0 %v238
        %290 = vmatpush.msra.mxu0 %v234
        %291 = vmatmul.f32.gmra.mxu0 %v252
        %v292 = vpop.f32.mrf.mxu0
        %v293 = vadd.f32 0.0, %v292
        %294 = vmatmul.f32.gmra.mxu0 %v255
        %v295 = vpop.f32.mrf.mxu0
        %v296 = vadd.f32 0.0, %v295
        %297 = vmatmul.f32.gmra.mxu0 %v258
        %v298 = vpop.f32.mrf.mxu0
        %v299 = vadd.f32 0.0, %v298
        %300 = vmatmul.f32.gmra.mxu0 %v261
        %v301 = vpop.f32.mrf.mxu0
        %v302 = vadd.f32 0.0, %v301
        %303 = vmatmul.f32.gmra.mxu0 %v264
        %v304 = vpop.f32.mrf.mxu0
        %v305 = vadd.f32 0.0, %v304
        %306 = vmatmul.f32.gmra.mxu0 %v267
        %v307 = vpop.f32.mrf.mxu0
        %v308 = vadd.f32 0.0, %v307
        %309 = vmatmul.f32.gmra.mxu0 %v270
        %v310 = vpop.f32.mrf.mxu0
        %v311 = vadd.f32 0.0, %v310
        %312 = vmatmul.f32.gmra.mxu0 %v273
        %v313 = vpop.f32.mrf.mxu0
        %v314 = vadd.f32 0.0, %v313
        %315 = vdwg.mxu0
        %316 = vmatpush.msra.mxu0 0.0
        %317 = vmatpush.msra.mxu0 0.0
        %318 = vmatpush.msra.mxu0 0.0
        %319 = vmatpush.msra.mxu0 0.0
        %320 = vmatpush.msra.mxu0 0.0
        %321 = vmatpush.msra.mxu0 0.0
        %322 = vmatpush.msra.mxu0 0.0
        %323 = vmatpush.msra.mxu0 0.0
        %324 = vmatpush.msra.mxu0 0.0
        %325 = vmatpush.msra.mxu0 0.0
        %326 = vmatpush.msra.mxu0 0.0
        %327 = vmatpush.msra.mxu0 0.0
        %328 = vmatpush.msra.mxu0 %v247
        %329 = vmatpush.msra.mxu0 %v243
        %330 = vmatpush.msra.mxu0 %v239
        %331 = vmatpush.msra.mxu0 %v235
        %332 = vmatmul.f32.gmra.mxu0 %v252
        %v333 = vpop.f32.mrf.mxu0
        %v334 = vadd.f32 0.0, %v333
        %335 = vmatmul.f32.gmra.mxu0 %v255
        %v336 = vpop.f32.mrf.mxu0
        %v337 = vadd.f32 0.0, %v336
        %338 = vmatmul.f32.gmra.mxu0 %v258
        %v339 = vpop.f32.mrf.mxu0
        %v340 = vadd.f32 0.0, %v339
        %341 = vmatmul.f32.gmra.mxu0 %v261
        %v342 = vpop.f32.mrf.mxu0
        %v343 = vadd.f32 0.0, %v342
        %344 = vmatmul.f32.gmra.mxu0 %v264
        %v345 = vpop.f32.mrf.mxu0
        %v346 = vadd.f32 0.0, %v345
        %347 = vmatmul.f32.gmra.mxu0 %v267
        %v348 = vpop.f32.mrf.mxu0
        %v349 = vadd.f32 0.0, %v348
        %350 = vmatmul.f32.gmra.mxu0 %v270
        %v351 = vpop.f32.mrf.mxu0
        %v352 = vadd.f32 0.0, %v351
        %353 = vmatmul.f32.gmra.mxu0 %v273
        %v354 = vpop.f32.mrf.mxu0
        %v355 = vadd.f32 0.0, %v354
        %356 = vdwg.mxu0
        %357 = vmatpush.msra.mxu0 0.0
        %358 = vmatpush.msra.mxu0 0.0
        %359 = vmatpush.msra.mxu0 0.0
        %360 = vmatpush.msra.mxu0 0.0
        %361 = vmatpush.msra.mxu0 0.0
        %362 = vmatpush.msra.mxu0 0.0
        %363 = vmatpush.msra.mxu0 0.0
        %364 = vmatpush.msra.mxu0 0.0
        %365 = vmatpush.msra.mxu0 0.0
        %366 = vmatpush.msra.mxu0 0.0
        %367 = vmatpush.msra.mxu0 0.0
        %368 = vmatpush.msra.mxu0 0.0
        %369 = vmatpush.msra.mxu0 %v248
        %370 = vmatpush.msra.mxu0 %v244
        %371 = vmatpush.msra.mxu0 %v240
        %372 = vmatpush.msra.mxu0 %v236
        %373 = vmatmul.f32.gmra.mxu0 %v252
        %v374 = vpop.f32.mrf.mxu0
        %v375 = vadd.f32 0.0, %v374
        %376 = vmatmul.f32.gmra.mxu0 %v255
        %v377 = vpop.f32.mrf.mxu0
        %v378 = vadd.f32 0.0, %v377
        %379 = vmatmul.f32.gmra.mxu0 %v258
        %v380 = vpop.f32.mrf.mxu0
        %v381 = vadd.f32 0.0, %v380
        %382 = vmatmul.f32.gmra.mxu0 %v261
        %v383 = vpop.f32.mrf.mxu0
        %v384 = vadd.f32 0.0, %v383
        %385 = vmatmul.f32.gmra.mxu0 %v264
        %v386 = vpop.f32.mrf.mxu0
        %v387 = vadd.f32 0.0, %v386
        %388 = vmatmul.f32.gmra.mxu0 %v267
        %v389 = vpop.f32.mrf.mxu0
        %v390 = vadd.f32 0.0, %v389
        %391 = vmatmul.f32.gmra.mxu0 %v270
        %v392 = vpop.f32.mrf.mxu0
        %v393 = vadd.f32 0.0, %v392
        %394 = vmatmul.f32.gmra.mxu0 %v273
        %v395 = vpop.f32.mrf.mxu0
        %v396 = vadd.f32 0.0, %v395
        %397 = vdwg.mxu0
        %398 = vmatpush.msra.mxu0 0.0
        %399 = vmatpush.msra.mxu0 0.0
        %400 = vmatpush.msra.mxu0 0.0
        %401 = vmatpush.msra.mxu0 0.0
        %402 = vmatpush.msra.mxu0 0.0
        %403 = vmatpush.msra.mxu0 0.0
        %404 = vmatpush.msra.mxu0 0.0
        %405 = vmatpush.msra.mxu0 0.0
        %406 = vmatpush.msra.mxu0 0.0
        %407 = vmatpush.msra.mxu0 0.0
        %408 = vmatpush.msra.mxu0 0.0
        %409 = vmatpush.msra.mxu0 0.0
        %410 = vmatpush.msra.mxu0 %v249
        %411 = vmatpush.msra.mxu0 %v245
        %412 = vmatpush.msra.mxu0 %v241
        %413 = vmatpush.msra.mxu0 %v237
        %414 = vmatmul.f32.gmra.mxu0 %v252
        %v415 = vpop.f32.mrf.mxu0
        %v416 = vadd.f32 0.0, %v415
        %417 = vmatmul.f32.gmra.mxu0 %v255
        %v418 = vpop.f32.mrf.mxu0
        %v419 = vadd.f32 0.0, %v418
        %420 = vmatmul.f32.gmra.mxu0 %v258
        %v421 = vpop.f32.mrf.mxu0
        %v422 = vadd.f32 0.0, %v421
        %423 = vmatmul.f32.gmra.mxu0 %v261
        %v424 = vpop.f32.mrf.mxu0
        %v425 = vadd.f32 0.0, %v424
        %426 = vmatmul.f32.gmra.mxu0 %v264
        %v427 = vpop.f32.mrf.mxu0
        %v428 = vadd.f32 0.0, %v427
        %429 = vmatmul.f32.gmra.mxu0 %v267
        %v430 = vpop.f32.mrf.mxu0
        %v431 = vadd.f32 0.0, %v430
        %432 = vmatmul.f32.gmra.mxu0 %v270
        %v433 = vpop.f32.mrf.mxu0
        %v434 = vadd.f32 0.0, %v433
        %435 = vmatmul.f32.gmra.mxu0 %v273
        %v436 = vpop.f32.mrf.mxu0
        %v437 = vadd.f32 0.0, %v436
        %438 = vdwg.mxu0
        %v439 = vmul.f32 %v293, %v293
        %v440 = vmul.f32 %v334, %v334
        %v441 = vmul.f32 %v375, %v375
        %v442 = vmul.f32 %v416, %v416
        %v443 = vmul.f32 %v296, %v296
        %v444 = vmul.f32 %v337, %v337
        %v445 = vmul.f32 %v378, %v378
        %v446 = vmul.f32 %v419, %v419
        %v447 = vmul.f32 %v299, %v299
        %v448 = vmul.f32 %v340, %v340
        %v449 = vmul.f32 %v381, %v381
        %v450 = vmul.f32 %v422, %v422
        %v451 = vmul.f32 %v302, %v302
        %v452 = vmul.f32 %v343, %v343
        %v453 = vmul.f32 %v384, %v384
        %v454 = vmul.f32 %v425, %v425
        %v455 = vmul.f32 %v305, %v305
        %v456 = vmul.f32 %v346, %v346
        %v457 = vmul.f32 %v387, %v387
        %v458 = vmul.f32 %v428, %v428
        %v459 = vmul.f32 %v308, %v308
        %v460 = vmul.f32 %v349, %v349
        %v461 = vmul.f32 %v390, %v390
        %v462 = vmul.f32 %v431, %v431
        %v463 = vmul.f32 %v311, %v311
        %v464 = vmul.f32 %v352, %v352
        %v465 = vmul.f32 %v393, %v393
        %v466 = vmul.f32 %v434, %v434
        %v467 = vmul.f32 %v314, %v314
        %v468 = vmul.f32 %v355, %v355
        %v469 = vmul.f32 %v396, %v396
        %v470 = vmul.f32 %v437, %v437
        %v471 = vld [vmem:[%s2] sm:$0xff]
        %v472 = vld [vmem:[%s2 + $0x8] sm:$0xff]
        %v473 = vld [vmem:[%s2 + $0x10] sm:$0xff]
        %v474 = vld [vmem:[%s2 + $0x18] sm:$0xff]
        %v475 = vld [vmem:[%s2 + $0x20] sm:$0xff]
        %v476 = vld [vmem:[%s2 + $0x28] sm:$0xff]
        %v477 = vld [vmem:[%s2 + $0x30] sm:$0xff]
        %v478 = vld [vmem:[%s2 + $0x38] sm:$0xff]
        %v479 = vld [vmem:[%s2 + $0x40] sm:$0xff]
        %v480 = vld [vmem:[%s2 + $0x48] sm:$0xff]
        %v481 = vld [vmem:[%s2 + $0x50] sm:$0xff]
        %v482 = vld [vmem:[%s2 + $0x58] sm:$0xff]
        %v483 = vld [vmem:[%s2 + $0x60] sm:$0xff]
        %v484 = vld [vmem:[%s2 + $0x68] sm:$0xff]
        %v485 = vld [vmem:[%s2 + $0x70] sm:$0xff]
        %v486 = vld [vmem:[%s2 + $0x78] sm:$0xff]
        %v487 = vld [vmem:[%s2 + $0x80] sm:$0xff]
        %v488 = vld [vmem:[%s2 + $0x88] sm:$0xff]
        %v489 = vld [vmem:[%s2 + $0x90] sm:$0xff]
        %v490 = vld [vmem:[%s2 + $0x98] sm:$0xff]
        %v491 = vld [vmem:[%s2 + $0xa0] sm:$0xff]
        %v492 = vld [vmem:[%s2 + $0xa8] sm:$0xff]
        %v493 = vld [vmem:[%s2 + $0xb0] sm:$0xff]
        %v494 = vld [vmem:[%s2 + $0xb8] sm:$0xff]
        %v495 = vld [vmem:[%s2 + $0xc0] sm:$0xff]
        %v496 = vld [vmem:[%s2 + $0xc8] sm:$0xff]
        %v497 = vld [vmem:[%s2 + $0xd0] sm:$0xff]
        %v498 = vld [vmem:[%s2 + $0xd8] sm:$0xff]
        %v499 = vld [vmem:[%s2 + $0xe0] sm:$0xff]
        %v500 = vld [vmem:[%s2 + $0xe8] sm:$0xff]
        %v501 = vld [vmem:[%s2 + $0xf0] sm:$0xff]
        %v502 = vld [vmem:[%s2 + $0xf8] sm:$0xff]
        %v503 = vld [vmem:[%s2 + $0x100] sm:$0xff]
        %v504 = vld [vmem:[%s2 + $0x108] sm:$0xff]
        %v505 = vld [vmem:[%s2 + $0x110] sm:$0xff]
        %v506 = vld [vmem:[%s2 + $0x118] sm:$0xff]
        %v507 = vld [vmem:[%s2 + $0x120] sm:$0xff]
        %v508 = vld [vmem:[%s2 + $0x128] sm:$0xff]
        %v509 = vld [vmem:[%s2 + $0x130] sm:$0xff]
        %v510 = vld [vmem:[%s2 + $0x138] sm:$0xff]
        %v511 = vld [vmem:[%s2 + $0x140] sm:$0xff]
        %v512 = vld [vmem:[%s2 + $0x148] sm:$0xff]
        %v513 = vld [vmem:[%s2 + $0x150] sm:$0xff]
        %v514 = vld [vmem:[%s2 + $0x158] sm:$0xff]
        %v515 = vld [vmem:[%s2 + $0x160] sm:$0xff]
        %v516 = vld [vmem:[%s2 + $0x168] sm:$0xff]
        %v517 = vld [vmem:[%s2 + $0x170] sm:$0xff]
        %v518 = vld [vmem:[%s2 + $0x178] sm:$0xff]
        %v519 = vld [vmem:[%s2 + $0x180] sm:$0xff]
        %v520 = vld [vmem:[%s2 + $0x188] sm:$0xff]
        %v521 = vld [vmem:[%s2 + $0x190] sm:$0xff]
        %v522 = vld [vmem:[%s2 + $0x198] sm:$0xff]
        %v523 = vld [vmem:[%s2 + $0x1a0] sm:$0xff]
        %v524 = vld [vmem:[%s2 + $0x1a8] sm:$0xff]
        %v525 = vld [vmem:[%s2 + $0x1b0] sm:$0xff]
        %v526 = vld [vmem:[%s2 + $0x1b8] sm:$0xff]
        %v527 = vld [vmem:[%s2 + $0x1c0] sm:$0xff]
        %v528 = vld [vmem:[%s2 + $0x1c8] sm:$0xff]
        %v529 = vld [vmem:[%s2 + $0x1d0] sm:$0xff]
        %v530 = vld [vmem:[%s2 + $0x1d8] sm:$0xff]
        %v531 = vld [vmem:[%s2 + $0x1e0] sm:$0xff]
        %v532 = vld [vmem:[%s2 + $0x1e8] sm:$0xff]
        %v533 = vld [vmem:[%s2 + $0x1f0] sm:$0xff]
        %v534 = vld [vmem:[%s2 + $0x1f8] sm:$0xff]
        %535 = vmatpush.msra.mxu0 %v486
        %536 = vmatpush.msra.mxu0 %v485
        %537 = vmatpush.msra.mxu0 %v484
        %538 = vmatpush.msra.mxu0 %v483
        %539 = vmatpush.msra.mxu0 %v482
        %540 = vmatpush.msra.mxu0 %v481
        %541 = vmatpush.msra.mxu0 %v480
        %542 = vmatpush.msra.mxu0 %v479
        %543 = vmatpush.msra.mxu0 %v478
        %544 = vmatpush.msra.mxu0 %v477
        %545 = vmatpush.msra.mxu0 %v476
        %546 = vmatpush.msra.mxu0 %v475
        %547 = vmatpush.msra.mxu0 %v474
        %548 = vmatpush.msra.mxu0 %v473
        %549 = vmatpush.msra.mxu0 %v472
        %550 = vmatpush.msra.mxu0 %v471
        %551 = vmatmul.f32.gmra.mxu0 %v439
        %v552 = vpop.f32.mrf.mxu0
        %v553 = vadd.f32 1e-05, %v552
        %554 = vmatmul.f32.gmra.mxu0 %v443
        %v555 = vpop.f32.mrf.mxu0
        %v556 = vadd.f32 1e-05, %v555
        %557 = vmatmul.f32.gmra.mxu0 %v447
        %v558 = vpop.f32.mrf.mxu0
        %v559 = vadd.f32 1e-05, %v558
        %560 = vmatmul.f32.gmra.mxu0 %v451
        %v561 = vpop.f32.mrf.mxu0
        %v562 = vadd.f32 1e-05, %v561
        %563 = vmatmul.f32.gmra.mxu0 %v455
        %v564 = vpop.f32.mrf.mxu0
        %v565 = vadd.f32 1e-05, %v564
        %566 = vmatmul.f32.gmra.mxu0 %v459
        %v567 = vpop.f32.mrf.mxu0
        %v568 = vadd.f32 1e-05, %v567
        %569 = vmatmul.f32.gmra.mxu0 %v463
        %v570 = vpop.f32.mrf.mxu0
        %v571 = vadd.f32 1e-05, %v570
        %572 = vmatmul.f32.gmra.mxu0 %v467
        %v573 = vpop.f32.mrf.mxu0
        %v574 = vadd.f32 1e-05, %v573
        %575 = vdwg.mxu0
        %576 = vmatpush.msra.mxu0 %v502
        %577 = vmatpush.msra.mxu0 %v501
        %578 = vmatpush.msra.mxu0 %v500
        %579 = vmatpush.msra.mxu0 %v499
        %580 = vmatpush.msra.mxu0 %v498
        %581 = vmatpush.msra.mxu0 %v497
        %582 = vmatpush.msra.mxu0 %v496
        %583 = vmatpush.msra.mxu0 %v495
        %584 = vmatpush.msra.mxu0 %v494
        %585 = vmatpush.msra.mxu0 %v493
        %586 = vmatpush.msra.mxu0 %v492
        %587 = vmatpush.msra.mxu0 %v491
        %588 = vmatpush.msra.mxu0 %v490
        %589 = vmatpush.msra.mxu0 %v489
        %590 = vmatpush.msra.mxu0 %v488
        %591 = vmatpush.msra.mxu0 %v487
        %592 = vmatmul.f32.gmra.mxu0 %v440
        %v593 = vpop.f32.mrf.mxu0
        %v594 = vadd.f32 %v553, %v593
        %595 = vmatmul.f32.gmra.mxu0 %v444
        %v596 = vpop.f32.mrf.mxu0
        %v597 = vadd.f32 %v556, %v596
        %598 = vmatmul.f32.gmra.mxu0 %v448
        %v599 = vpop.f32.mrf.mxu0
        %v600 = vadd.f32 %v559, %v599
        %601 = vmatmul.f32.gmra.mxu0 %v452
        %v602 = vpop.f32.mrf.mxu0
        %v603 = vadd.f32 %v562, %v602
        %604 = vmatmul.f32.gmra.mxu0 %v456
        %v605 = vpop.f32.mrf.mxu0
        %v606 = vadd.f32 %v565, %v605
        %607 = vmatmul.f32.gmra.mxu0 %v460
        %v608 = vpop.f32.mrf.mxu0
        %v609 = vadd.f32 %v568, %v608
        %610 = vmatmul.f32.gmra.mxu0 %v464
        %v611 = vpop.f32.mrf.mxu0
        %v612 = vadd.f32 %v571, %v611
        %613 = vmatmul.f32.gmra.mxu0 %v468
        %v614 = vpop.f32.mrf.mxu0
        %v615 = vadd.f32 %v574, %v614
        %616 = vdwg.mxu0
        %617 = vmatpush.msra.mxu0 %v518
        %618 = vmatpush.msra.mxu0 %v517
        %619 = vmatpush.msra.mxu0 %v516
        %620 = vmatpush.msra.mxu0 %v515
        %621 = vmatpush.msra.mxu0 %v514
        %622 = vmatpush.msra.mxu0 %v513
        %623 = vmatpush.msra.mxu0 %v512
        %624 = vmatpush.msra.mxu0 %v511
        %625 = vmatpush.msra.mxu0 %v510
        %626 = vmatpush.msra.mxu0 %v509
        %627 = vmatpush.msra.mxu0 %v508
        %628 = vmatpush.msra.mxu0 %v507
        %629 = vmatpush.msra.mxu0 %v506
        %630 = vmatpush.msra.mxu0 %v505
        %631 = vmatpush.msra.mxu0 %v504
        %632 = vmatpush.msra.mxu0 %v503
        %633 = vmatmul.f32.gmra.mxu0 %v441
        %v634 = vpop.f32.mrf.mxu0
        %v635 = vadd.f32 %v594, %v634
        %636 = vmatmul.f32.gmra.mxu0 %v445
        %v637 = vpop.f32.mrf.mxu0
        %v638 = vadd.f32 %v597, %v637
        %639 = vmatmul.f32.gmra.mxu0 %v449
        %v640 = vpop.f32.mrf.mxu0
        %v641 = vadd.f32 %v600, %v640
        %642 = vmatmul.f32.gmra.mxu0 %v453
        %v643 = vpop.f32.mrf.mxu0
        %v644 = vadd.f32 %v603, %v643
        %645 = vmatmul.f32.gmra.mxu0 %v457
        %v646 = vpop.f32.mrf.mxu0
        %v647 = vadd.f32 %v606, %v646
        %648 = vmatmul.f32.gmra.mxu0 %v461
        %v649 = vpop.f32.mrf.mxu0
        %v650 = vadd.f32 %v609, %v649
        %651 = vmatmul.f32.gmra.mxu0 %v465
        %v652 = vpop.f32.mrf.mxu0
        %v653 = vadd.f32 %v612, %v652
        %654 = vmatmul.f32.gmra.mxu0 %v469
        %v655 = vpop.f32.mrf.mxu0
        %v656 = vadd.f32 %v615, %v655
        %657 = vdwg.mxu0
        %658 = vmatpush.msra.mxu0 %v534
        %659 = vmatpush.msra.mxu0 %v533
        %660 = vmatpush.msra.mxu0 %v532
        %661 = vmatpush.msra.mxu0 %v531
        %662 = vmatpush.msra.mxu0 %v530
        %663 = vmatpush.msra.mxu0 %v529
        %664 = vmatpush.msra.mxu0 %v528
        %665 = vmatpush.msra.mxu0 %v527
        %666 = vmatpush.msra.mxu0 %v526
        %667 = vmatpush.msra.mxu0 %v525
        %668 = vmatpush.msra.mxu0 %v524
        %669 = vmatpush.msra.mxu0 %v523
        %670 = vmatpush.msra.mxu0 %v522
        %671 = vmatpush.msra.mxu0 %v521
        %672 = vmatpush.msra.mxu0 %v520
        %673 = vmatpush.msra.mxu0 %v519
        %674 = vmatmul.f32.gmra.mxu0 %v442
        %v675 = vpop.f32.mrf.mxu0
        %v676 = vadd.f32 %v635, %v675
        %677 = vmatmul.f32.gmra.mxu0 %v446
        %v678 = vpop.f32.mrf.mxu0
        %v679 = vadd.f32 %v638, %v678
        %680 = vmatmul.f32.gmra.mxu0 %v450
        %v681 = vpop.f32.mrf.mxu0
        %v682 = vadd.f32 %v641, %v681
        %683 = vmatmul.f32.gmra.mxu0 %v454
        %v684 = vpop.f32.mrf.mxu0
        %v685 = vadd.f32 %v644, %v684
        %686 = vmatmul.f32.gmra.mxu0 %v458
        %v687 = vpop.f32.mrf.mxu0
        %v688 = vadd.f32 %v647, %v687
        %689 = vmatmul.f32.gmra.mxu0 %v462
        %v690 = vpop.f32.mrf.mxu0
        %v691 = vadd.f32 %v650, %v690
        %692 = vmatmul.f32.gmra.mxu0 %v466
        %v693 = vpop.f32.mrf.mxu0
        %v694 = vadd.f32 %v653, %v693
        %695 = vmatmul.f32.gmra.mxu0 %v470
        %v696 = vpop.f32.mrf.mxu0
        %v697 = vadd.f32 %v656, %v696
        %698 = vdwg.mxu0
        %v699 = vrsqrt.pop %v676
        %v700 = vmul.f32 %v699, %v676
        %v701 = vmul.f32 %v700, %v699
        %v702 = vmul.f32 0.5, %v701
        %v703 = vsub.f32 1.5, %v702
        %v704 = vmul.f32 %v699, %v703
        %vm705 = vweird.f32 %v676
        %vm706 = vweird.f32 %v699
        %vm707 = vmor %vm705, %vm706
        %v708 = vsel %vm707, %v699, %v704
        %v709 = vrsqrt.pop %v679
        %v710 = vmul.f32 %v709, %v679
        %v711 = vmul.f32 %v710, %v709
        %v712 = vmul.f32 0.5, %v711
        %v713 = vsub.f32 1.5, %v712
        %v714 = vmul.f32 %v709, %v713
        %vm715 = vweird.f32 %v679
        %vm716 = vweird.f32 %v709
        %vm717 = vmor %vm715, %vm716
        %v718 = vsel %vm717, %v709, %v714
        %v719 = vrsqrt.pop %v682
        %v720 = vmul.f32 %v719, %v682
        %v721 = vmul.f32 %v720, %v719
        %v722 = vmul.f32 0.5, %v721
        %v723 = vsub.f32 1.5, %v722
        %v724 = vmul.f32 %v719, %v723
        %vm725 = vweird.f32 %v682
        %vm726 = vweird.f32 %v719
        %vm727 = vmor %vm725, %vm726
        %v728 = vsel %vm727, %v719, %v724
        %v729 = vrsqrt.pop %v685
        %v730 = vmul.f32 %v729, %v685
        %v731 = vmul.f32 %v730, %v729
        %v732 = vmul.f32 0.5, %v731
        %v733 = vsub.f32 1.5, %v732
        %v734 = vmul.f32 %v729, %v733
        %vm735 = vweird.f32 %v685
        %vm736 = vweird.f32 %v729
        %vm737 = vmor %vm735, %vm736
        %v738 = vsel %vm737, %v729, %v734
        %v739 = vrsqrt.pop %v688
        %v740 = vmul.f32 %v739, %v688
        %v741 = vmul.f32 %v740, %v739
        %v742 = vmul.f32 0.5, %v741
        %v743 = vsub.f32 1.5, %v742
        %v744 = vmul.f32 %v739, %v743
        %vm745 = vweird.f32 %v688
        %vm746 = vweird.f32 %v739
        %vm747 = vmor %vm745, %vm746
        %v748 = vsel %vm747, %v739, %v744
        %v749 = vrsqrt.pop %v691
        %v750 = vmul.f32 %v749, %v691
        %v751 = vmul.f32 %v750, %v749
        %v752 = vmul.f32 0.5, %v751
        %v753 = vsub.f32 1.5, %v752
        %v754 = vmul.f32 %v749, %v753
        %vm755 = vweird.f32 %v691
        %vm756 = vweird.f32 %v749
        %vm757 = vmor %vm755, %vm756
        %v758 = vsel %vm757, %v749, %v754
        %v759 = vrsqrt.pop %v694
        %v760 = vmul.f32 %v759, %v694
        %v761 = vmul.f32 %v760, %v759
        %v762 = vmul.f32 0.5, %v761
        %v763 = vsub.f32 1.5, %v762
        %v764 = vmul.f32 %v759, %v763
        %vm765 = vweird.f32 %v694
        %vm766 = vweird.f32 %v759
        %vm767 = vmor %vm765, %vm766
        %v768 = vsel %vm767, %v759, %v764
        %v769 = vrsqrt.pop %v697
        %v770 = vmul.f32 %v769, %v697
        %v771 = vmul.f32 %v770, %v769
        %v772 = vmul.f32 0.5, %v771
        %v773 = vsub.f32 1.5, %v772
        %v774 = vmul.f32 %v769, %v773
        %vm775 = vweird.f32 %v697
        %vm776 = vweird.f32 %v769
        %vm777 = vmor %vm775, %vm776
        %v778 = vsel %vm777, %v769, %v774
        %v779 = vld [vmem:[%s3] sm:$0xff]
        %v780 = vld [vmem:[%s3 + $0x8] sm:$0xff]
        %v781 = vld [vmem:[%s3 + $0x10] sm:$0xff]
        %v782 = vld [vmem:[%s3 + $0x18] sm:$0xff]
        %v783 = vld [vmem:[%s3 + $0x20] sm:$0xff]
        %v784 = vld [vmem:[%s3 + $0x28] sm:$0xff]
        %v785 = vld [vmem:[%s3 + $0x30] sm:$0xff]
        %v786 = vld [vmem:[%s3 + $0x38] sm:$0xff]
        %vm787 = vcmask 130048
        %v789 = vsel %vm787, %v708, 0
        %v792 = vsel %vm787, %v718, 0
        %v795 = vsel %vm787, %v728, 0
        %v798 = vsel %vm787, %v738, 0
        %v801 = vsel %vm787, %v748, 0
        %v804 = vsel %vm787, %v758, 0
        %v807 = vsel %vm787, %v768, 0
        %v810 = vsel %vm787, %v778, 0
        %812 = vmatpush.msra.mxu0 0.0
        %813 = vmatpush.msra.mxu0 0.0
        %814 = vmatpush.msra.mxu0 0.0
        %815 = vmatpush.msra.mxu0 0.0
        %816 = vmatpush.msra.mxu0 0.0
        %817 = vmatpush.msra.mxu0 0.0
        %818 = vmatpush.msra.mxu0 0.0
        %819 = vmatpush.msra.mxu0 0.0
        %820 = vmatpush.msra.mxu0 0.0
        %821 = vmatpush.msra.mxu0 0.0
        %822 = vmatpush.msra.mxu0 0.0
        %823 = vmatpush.msra.mxu0 0.0
        %824 = vmatpush.msra.mxu0 0.0
        %825 = vmatpush.msra.mxu0 0.0
        %826 = vmatpush.msra.mxu0 %v783
        %827 = vmatpush.msra.mxu0 %v779
        %828 = vmatmul.f32.gmra.mxu0 %v789
        %v829 = vpop.f32.mrf.mxu0
        %v830 = vadd.f32 0.0, %v829
        %831 = vmatmul.f32.gmra.mxu0 %v792
        %v832 = vpop.f32.mrf.mxu0
        %v833 = vadd.f32 0.0, %v832
        %834 = vmatmul.f32.gmra.mxu0 %v795
        %v835 = vpop.f32.mrf.mxu0
        %v836 = vadd.f32 0.0, %v835
        %837 = vmatmul.f32.gmra.mxu0 %v798
        %v838 = vpop.f32.mrf.mxu0
        %v839 = vadd.f32 0.0, %v838
        %840 = vmatmul.f32.gmra.mxu0 %v801
        %v841 = vpop.f32.mrf.mxu0
        %v842 = vadd.f32 0.0, %v841
        %843 = vmatmul.f32.gmra.mxu0 %v804
        %v844 = vpop.f32.mrf.mxu0
        %v845 = vadd.f32 0.0, %v844
        %846 = vmatmul.f32.gmra.mxu0 %v807
        %v847 = vpop.f32.mrf.mxu0
        %v848 = vadd.f32 0.0, %v847
        %849 = vmatmul.f32.gmra.mxu0 %v810
        %v850 = vpop.f32.mrf.mxu0
        %v851 = vadd.f32 0.0, %v850
        %852 = vdwg.mxu0
        %853 = vmatpush.msra.mxu0 0.0
        %854 = vmatpush.msra.mxu0 0.0
        %855 = vmatpush.msra.mxu0 0.0
        %856 = vmatpush.msra.mxu0 0.0
        %857 = vmatpush.msra.mxu0 0.0
        %858 = vmatpush.msra.mxu0 0.0
        %859 = vmatpush.msra.mxu0 0.0
        %860 = vmatpush.msra.mxu0 0.0
        %861 = vmatpush.msra.mxu0 0.0
        %862 = vmatpush.msra.mxu0 0.0
        %863 = vmatpush.msra.mxu0 0.0
        %864 = vmatpush.msra.mxu0 0.0
        %865 = vmatpush.msra.mxu0 0.0
        %866 = vmatpush.msra.mxu0 0.0
        %867 = vmatpush.msra.mxu0 %v784
        %868 = vmatpush.msra.mxu0 %v780
        %869 = vmatmul.f32.gmra.mxu0 %v789
        %v870 = vpop.f32.mrf.mxu0
        %v871 = vadd.f32 0.0, %v870
        %872 = vmatmul.f32.gmra.mxu0 %v792
        %v873 = vpop.f32.mrf.mxu0
        %v874 = vadd.f32 0.0, %v873
        %875 = vmatmul.f32.gmra.mxu0 %v795
        %v876 = vpop.f32.mrf.mxu0
        %v877 = vadd.f32 0.0, %v876
        %878 = vmatmul.f32.gmra.mxu0 %v798
        %v879 = vpop.f32.mrf.mxu0
        %v880 = vadd.f32 0.0, %v879
        %881 = vmatmul.f32.gmra.mxu0 %v801
        %v882 = vpop.f32.mrf.mxu0
        %v883 = vadd.f32 0.0, %v882
        %884 = vmatmul.f32.gmra.mxu0 %v804
        %v885 = vpop.f32.mrf.mxu0
        %v886 = vadd.f32 0.0, %v885
        %887 = vmatmul.f32.gmra.mxu0 %v807
        %v888 = vpop.f32.mrf.mxu0
        %v889 = vadd.f32 0.0, %v888
        %890 = vmatmul.f32.gmra.mxu0 %v810
        %v891 = vpop.f32.mrf.mxu0
        %v892 = vadd.f32 0.0, %v891
        %893 = vdwg.mxu0
        %894 = vmatpush.msra.mxu0 0.0
        %895 = vmatpush.msra.mxu0 0.0
        %896 = vmatpush.msra.mxu0 0.0
        %897 = vmatpush.msra.mxu0 0.0
        %898 = vmatpush.msra.mxu0 0.0
        %899 = vmatpush.msra.mxu0 0.0
        %900 = vmatpush.msra.mxu0 0.0
        %901 = vmatpush.msra.mxu0 0.0
        %902 = vmatpush.msra.mxu0 0.0
        %903 = vmatpush.msra.mxu0 0.0
        %904 = vmatpush.msra.mxu0 0.0
        %905 = vmatpush.msra.mxu0 0.0
        %906 = vmatpush.msra.mxu0 0.0
        %907 = vmatpush.msra.mxu0 0.0
        %908 = vmatpush.msra.mxu0 %v785
        %909 = vmatpush.msra.mxu0 %v781
        %910 = vmatmul.f32.gmra.mxu0 %v789
        %v911 = vpop.f32.mrf.mxu0
        %v912 = vadd.f32 0.0, %v911
        %913 = vmatmul.f32.gmra.mxu0 %v792
        %v914 = vpop.f32.mrf.mxu0
        %v915 = vadd.f32 0.0, %v914
        %916 = vmatmul.f32.gmra.mxu0 %v795
        %v917 = vpop.f32.mrf.mxu0
        %v918 = vadd.f32 0.0, %v917
        %919 = vmatmul.f32.gmra.mxu0 %v798
        %v920 = vpop.f32.mrf.mxu0
        %v921 = vadd.f32 0.0, %v920
        %922 = vmatmul.f32.gmra.mxu0 %v801
        %v923 = vpop.f32.mrf.mxu0
        %v924 = vadd.f32 0.0, %v923
        %925 = vmatmul.f32.gmra.mxu0 %v804
        %v926 = vpop.f32.mrf.mxu0
        %v927 = vadd.f32 0.0, %v926
        %928 = vmatmul.f32.gmra.mxu0 %v807
        %v929 = vpop.f32.mrf.mxu0
        %v930 = vadd.f32 0.0, %v929
        %931 = vmatmul.f32.gmra.mxu0 %v810
        %v932 = vpop.f32.mrf.mxu0
        %v933 = vadd.f32 0.0, %v932
        %934 = vdwg.mxu0
        %935 = vmatpush.msra.mxu0 0.0
        %936 = vmatpush.msra.mxu0 0.0
        %937 = vmatpush.msra.mxu0 0.0
        %938 = vmatpush.msra.mxu0 0.0
        %939 = vmatpush.msra.mxu0 0.0
        %940 = vmatpush.msra.mxu0 0.0
        %941 = vmatpush.msra.mxu0 0.0
        %942 = vmatpush.msra.mxu0 0.0
        %943 = vmatpush.msra.mxu0 0.0
        %944 = vmatpush.msra.mxu0 0.0
        %945 = vmatpush.msra.mxu0 0.0
        %946 = vmatpush.msra.mxu0 0.0
        %947 = vmatpush.msra.mxu0 0.0
        %948 = vmatpush.msra.mxu0 0.0
        %949 = vmatpush.msra.mxu0 %v786
        %950 = vmatpush.msra.mxu0 %v782
        %951 = vmatmul.f32.gmra.mxu0 %v789
        %v952 = vpop.f32.mrf.mxu0
        %v953 = vadd.f32 0.0, %v952
        %954 = vmatmul.f32.gmra.mxu0 %v792
        %v955 = vpop.f32.mrf.mxu0
        %v956 = vadd.f32 0.0, %v955
        %957 = vmatmul.f32.gmra.mxu0 %v795
        %v958 = vpop.f32.mrf.mxu0
        %v959 = vadd.f32 0.0, %v958
        %960 = vmatmul.f32.gmra.mxu0 %v798
        %v961 = vpop.f32.mrf.mxu0
        %v962 = vadd.f32 0.0, %v961
        %963 = vmatmul.f32.gmra.mxu0 %v801
        %v964 = vpop.f32.mrf.mxu0
        %v965 = vadd.f32 0.0, %v964
        %966 = vmatmul.f32.gmra.mxu0 %v804
        %v967 = vpop.f32.mrf.mxu0
        %v968 = vadd.f32 0.0, %v967
        %969 = vmatmul.f32.gmra.mxu0 %v807
        %v970 = vpop.f32.mrf.mxu0
        %v971 = vadd.f32 0.0, %v970
        %972 = vmatmul.f32.gmra.mxu0 %v810
        %v973 = vpop.f32.mrf.mxu0
        %v974 = vadd.f32 0.0, %v973
        %975 = vdwg.mxu0
        %v976 = vmul.f32 %v293, %v830
        %v977 = vmul.f32 %v334, %v871
        %v978 = vmul.f32 %v375, %v912
        %v979 = vmul.f32 %v416, %v953
        %v980 = vmul.f32 %v296, %v833
        %v981 = vmul.f32 %v337, %v874
        %v982 = vmul.f32 %v378, %v915
        %v983 = vmul.f32 %v419, %v956
        %v984 = vmul.f32 %v299, %v836
        %v985 = vmul.f32 %v340, %v877
        %v986 = vmul.f32 %v381, %v918
        %v987 = vmul.f32 %v422, %v959
        %v988 = vmul.f32 %v302, %v839
        %v989 = vmul.f32 %v343, %v880
        %v990 = vmul.f32 %v384, %v921
        %v991 = vmul.f32 %v425, %v962
        %v992 = vmul.f32 %v305, %v842
        %v993 = vmul.f32 %v346, %v883
        %v994 = vmul.f32 %v387, %v924
        %v995 = vmul.f32 %v428, %v965
        %v996 = vmul.f32 %v308, %v845
        %v997 = vmul.f32 %v349, %v886
        %v998 = vmul.f32 %v390, %v927
        %v999 = vmul.f32 %v431, %v968
        %v1000 = vmul.f32 %v311, %v848
        %v1001 = vmul.f32 %v352, %v889
        %v1002 = vmul.f32 %v393, %v930
        %v1003 = vmul.f32 %v434, %v971
        %v1004 = vmul.f32 %v314, %v851
        %v1005 = vmul.f32 %v355, %v892
        %v1006 = vmul.f32 %v396, %v933
        %v1007 = vmul.f32 %v437, %v974
        %v1008 = vld [vmem:[%s4] sm:$0xf]
        %v1010 = vperm.slane %v1008, 0
        %v1011 = vperm.slane %v1008, 1
        %v1012 = vperm.slane %v1008, 2
        %v1013 = vperm.slane %v1008, 3
        %v1018 = vadd.f32 %v976, %v1010
        %v1019 = vadd.f32 %v977, %v1011
        %v1020 = vadd.f32 %v978, %v1012
        %v1021 = vadd.f32 %v979, %v1013
        %v1022 = vadd.f32 %v980, %v1010
        %v1023 = vadd.f32 %v981, %v1011
        %v1024 = vadd.f32 %v982, %v1012
        %v1025 = vadd.f32 %v983, %v1013
        %v1026 = vadd.f32 %v984, %v1010
        %v1027 = vadd.f32 %v985, %v1011
        %v1028 = vadd.f32 %v986, %v1012
        %v1029 = vadd.f32 %v987, %v1013
        %v1030 = vadd.f32 %v988, %v1010
        %v1031 = vadd.f32 %v989, %v1011
        %v1032 = vadd.f32 %v990, %v1012
        %v1033 = vadd.f32 %v991, %v1013
        %v1034 = vadd.f32 %v992, %v1010
        %v1035 = vadd.f32 %v993, %v1011
        %v1036 = vadd.f32 %v994, %v1012
        %v1037 = vadd.f32 %v995, %v1013
        %v1038 = vadd.f32 %v996, %v1010
        %v1039 = vadd.f32 %v997, %v1011
        %v1040 = vadd.f32 %v998, %v1012
        %v1041 = vadd.f32 %v999, %v1013
        %v1042 = vadd.f32 %v1000, %v1010
        %v1043 = vadd.f32 %v1001, %v1011
        %v1044 = vadd.f32 %v1002, %v1012
        %v1045 = vadd.f32 %v1003, %v1013
        %v1046 = vadd.f32 %v1004, %v1010
        %v1047 = vadd.f32 %v1005, %v1011
        %v1048 = vadd.f32 %v1006, %v1012
        %v1049 = vadd.f32 %v1007, %v1013
        %1050 = vst [vmem:[%s218] sm:$0xff] %v1018
        %1051 = vst [vmem:[%s218 + $0x20] sm:$0xff] %v1022
        %1052 = vst [vmem:[%s218 + $0x40] sm:$0xff] %v1026
        %1053 = vst [vmem:[%s218 + $0x60] sm:$0xff] %v1030
        %1054 = vst [vmem:[%s218 + $0x80] sm:$0xff] %v1034
        %1055 = vst [vmem:[%s218 + $0xa0] sm:$0xff] %v1038
        %1056 = vst [vmem:[%s218 + $0xc0] sm:$0xff] %v1042
        %1057 = vst [vmem:[%s218 + $0xe0] sm:$0xff] %v1046
        %s1058 = scalar_lea.vmem %s218, 8 [#allocation2]
        %1059 = vst [vmem:[%s1058] sm:$0xff] %v1019
        %1060 = vst [vmem:[%s1058 + $0x20] sm:$0xff] %v1023
        %1061 = vst [vmem:[%s1058 + $0x40] sm:$0xff] %v1027
        %1062 = vst [vmem:[%s1058 + $0x60] sm:$0xff] %v1031
        %1063 = vst [vmem:[%s1058 + $0x80] sm:$0xff] %v1035
        %1064 = vst [vmem:[%s1058 + $0xa0] sm:$0xff] %v1039
        %1065 = vst [vmem:[%s1058 + $0xc0] sm:$0xff] %v1043
        %1066 = vst [vmem:[%s1058 + $0xe0] sm:$0xff] %v1047
        %s1067 = scalar_lea.vmem %s218, 16 [#allocation2]
        %1068 = vst [vmem:[%s1067] sm:$0xff] %v1020
        %1069 = vst [vmem:[%s1067 + $0x20] sm:$0xff] %v1024
        %1070 = vst [vmem:[%s1067 + $0x40] sm:$0xff] %v1028
        %1071 = vst [vmem:[%s1067 + $0x60] sm:$0xff] %v1032
        %1072 = vst [vmem:[%s1067 + $0x80] sm:$0xff] %v1036
        %1073 = vst [vmem:[%s1067 + $0xa0] sm:$0xff] %v1040
        %1074 = vst [vmem:[%s1067 + $0xc0] sm:$0xff] %v1044
        %1075 = vst [vmem:[%s1067 + $0xe0] sm:$0xff] %v1048
        %s1076 = scalar_lea.vmem %s218, 24 [#allocation2]
        %1077 = vst [vmem:[%s1076] sm:$0xff] %v1021
        %1078 = vst [vmem:[%s1076 + $0x20] sm:$0xff] %v1025
        %1079 = vst [vmem:[%s1076 + $0x40] sm:$0xff] %v1029
        %1080 = vst [vmem:[%s1076 + $0x60] sm:$0xff] %v1033
        %1081 = vst [vmem:[%s1076 + $0x80] sm:$0xff] %v1037
        %1082 = vst [vmem:[%s1076 + $0xa0] sm:$0xff] %v1041
        %1083 = vst [vmem:[%s1076 + $0xc0] sm:$0xff] %v1045
        %1084 = vst [vmem:[%s1076 + $0xe0] sm:$0xff] %v1049
        %s1085 = sand.u32 %s137, 1
        %s1086 = scalar_lea.sflag [#allocation3], %s1085
        %s1087 = sand.u32 %s137, 1
        %s1088 = smul.addr %s1087, 256
        %s1089 = scalar_lea.vmem [#allocation2], %s1088
        // Predicated region
        $region41: #{tpu_custom_call.1} parent=39 // pred_check
          %p1090 = pneg %p147
        $region42: #{tpu_custom_call.1} parent=39 // pred_check_branch
          %1092 = sbr.rel (%p1090) target = $region44
        $region43: #{tpu_custom_call.1} parent=39 // pred_region
          %s1093 = smul.u32 8, %s19
          %1095 = vsyncadd %s1086, 0
          %s1096 = smul.addr %s1093, 4
          %s1097 = smul.addr %s1096, 8
          %s1098 = scalar_lea.hbm %s5, %s1097
          %s1099 = sshll.u32 %s1089, 4
          %s1100 = int_to_ptr.vmem [resolvable:$true] %s1099
          %s1101 = sshll.u32 %s1098, 4
          %s1102 = int_to_ptr.hbm [resolvable:$true] %s1101
          %1107 = dma.vmem_to_hbm [thread:$0]  %s1100, 4096, %s1102, %s1086, 128, 128, 8
        $region44: #{tpu_custom_call.1} parent=39 // pred_fallthru
          _
      $region40: #{tpu_custom_call.1} parent=5 // pred_fallthru
        _
      %p1108 = scmp.le.s32.totalorder 2, %s14
      // Predicated region
      $region45: #{tpu_custom_call.1} parent=5 // pred_check
        %p1109 = pneg %p1108
      $region46: #{tpu_custom_call.1} parent=5 // pred_check_branch
        %1111 = sbr.rel (%p1109) target = $region48
      $region47: #{tpu_custom_call.1} parent=5 // pred_region
        %s1112 = ssub.s32 %s14, 2
        // Predicated region
        $region49: #{tpu_custom_call.1} parent=47 // pred_check
          %p1113 = pneg %p153
        $region50: #{tpu_custom_call.1} parent=47 // pred_check_branch
          %1115 = sbr.rel (%p1113) target = $region52
        $region51: #{tpu_custom_call.1} parent=47 // pred_region
          %s1116 = sand.u32 %s138, 1
          %s1117 = scalar_lea.sflag [#allocation3], %s1116
          %s1118 = sand.u32 %s138, 1
          %s1119 = smul.addr %s1118, 256
          %s1120 = scalar_lea.vmem [#allocation2], %s1119
          %1122 = dma.done %s1117, 4096
        $region52: #{tpu_custom_call.1} parent=47 // pred_fallthru
          _
      $region48: #{tpu_custom_call.1} parent=5 // pred_fallthru
        _
    $region6: #{tpu_custom_call.1} parent=1 // loop_footer
      %s18 = sadd.s32 1, %s14
    $region7: #{tpu_custom_call.1} parent=1 // loop_footer_branch
      %13 = sbr.rel target = $region3
    $region8: #{tpu_custom_call.1} parent=1 // loop_exit
      _
    %1123 = vsyncpa [#allocation3], 1
    %s1124 = scalar_lea.sflag [#allocation3], 1
    %1125 = vsyncpa %s1124, 1

</llo_original>
